<compile_context>
chip_gen: v7x
topology: tpu7x:2x2x1
jax: 0.10.0
libtpu: 0.0.40
codegen_flags: <defaults>
</compile_context>

<pallas_src>
import jax
import jax.numpy as jnp
from jax.experimental import pallas as pl
from jax.experimental.pallas import tpu as pltpu

_MIB = 1024 * 1024


def agfw_kernel(x_ref, w1_ref, b1_ref, w2_ref, wsum_ref, wts_ref):
    # x_ref:    (TB, R, D)  block of batch elements' region features (native dtype)
    # w1_ref:   (D, H)      first linear weight (pre-transposed, VMEM-resident)
    # b1_ref:   (1, H)
    # w2_ref:   (1, H)      second linear weight as a row vector
    # wsum_ref: (TB, D)     output: attention-weighted feature sums
    # wts_ref:  (TB, R)     output: softmax attention weights (lane-dense)
    TB, R, D = x_ref.shape
    H = w1_ref.shape[1]

    # Native-dtype tile straight off the DMA -- no standalone f32 copy of x.
    x = x_ref[...]                                   # (TB, R, D)

    # Collapse leading dims for one big MXU matmul (free relayout when R % 8 == 0).
    xf = x.reshape(TB * R, D)
    h = jnp.dot(xf, w1_ref[...], preferred_element_type=jnp.float32)  # (TB*R, H) f32
    h = jnp.maximum(h + b1_ref[...], 0.0)

    # Second Linear (H -> 1) as a VPU multiply + lane reduction (no width-1
    # MXU matmul, no masked width-1 intermediates).  b2 is omitted: softmax is
    # shift-invariant, so it cannot change either output.
    h3 = h.reshape(TB, R, H)
    scores = jnp.sum(h3 * w2_ref[...], axis=-1)      # (TB, R) f32

    # Max-subtracted softmax over regions, exact normalization.
    m = jnp.max(scores, axis=-1, keepdims=True)      # (TB, 1)
    e = jnp.exp(scores - m)
    denom = jnp.sum(e, axis=-1, keepdims=True)       # (TB, 1)
    weights = e / denom                              # (TB, R)
    wts_ref[...] = weights.astype(wts_ref.dtype)

    # Weighted sum over regions; dtype promotion (e.g. bf16 x) happens
    # per-vreg inside the multiply -- no separate full-tile cast pass.
    wsum = jnp.sum(weights[:, :, None] * x, axis=1)  # (TB, D) f32
    wsum_ref[...] = wsum.astype(wsum_ref.dtype)


def _vmem_capacity_bytes():
    """Per-core VMEM capacity, with a conservative fallback (v7x: 64 MiB/TC)."""
    try:
        info = pltpu.get_tpu_info()
        cap = int(getattr(info, "vmem_capacity_bytes", 0) or 0)
        if cap > 0:
            return cap
    except Exception:
        pass
    return 64 * _MIB


def _choose_block_b(B, R, D, H, itemsize, vmem_budget_bytes):
    """Batch rows per grid step, budgeted against the real per-step footprint."""
    per_row = (
        2 * R * D * itemsize          # x tile, double-buffered
        + R * H * 4                   # hidden activations h (f32)
        + R * D * 4                   # weights*x product (f32)
        + 4 * (R + D)                 # scores / weights / wsum vectors (f32)
        + 2 * (D + R) * itemsize      # outputs, double-buffered
    )
    resident = (D * H + 2 * H) * itemsize  # W1, b1, W2 stay VMEM-resident
    budget = max(vmem_budget_bytes - resident, per_row)
    rows = max(1, budget // per_row)
    rows = min(rows, 2048)  # >= ~8-16 MiB x tiles are already at the HBM roofline
    if rows >= B:
        return B
    # Tiled second-to-last output dims must stay 8-aligned when block_b < B.
    return max(8, (rows // 8) * 8)


def agfw_forward(region_features, w1, b1, w2, b2, *, block_b=None):
    """region_features: (B, R, D). w1: (D, H) pre-transposed, b1: (H,),
    w2: (H,)/(H,1), b2: (1,) (accepted for API parity; mathematically a no-op).
    Returns (weighted_sum (B, D), weights (B, R, 1))."""
    del b2  # softmax shift-invariance: b2 cannot affect either output
    B, R, D = region_features.shape
    H = w1.shape[1]
    dtype = region_features.dtype
    itemsize = jnp.dtype(dtype).itemsize

    # Generation-aware VMEM limit: ~75% of per-core VMEM
    # (v7x 64 MiB/TC -> 48 MiB; v5e/v6e 128 MiB -> 96 MiB).
    vmem_cap = _vmem_capacity_bytes()
    vmem_limit = max(min(int(vmem_cap * 0.75), 100 * _MIB), 32 * _MIB)

    if block_b is None:
        block_b = _choose_block_b(B, R, D, H, itemsize, int(vmem_limit * 0.7))
    block_b = max(1, min(block_b, B))
    # Ensure at least two grid steps when the batch allows it, so both of
    # v7x's TensorCores get work on the "parallel" batch axis.
    if B >= 16:
        half = (((B + 1) // 2) + 7) // 8 * 8
        block_b = min(block_b, half)
    grid_b = pl.cdiv(B, block_b)

    b1_2d = b1.reshape(1, H)
    w2_row = w2.reshape(1, H)

    bytes_accessed = (
        B * R * D * itemsize                    # x read
        + (D * H + 2 * H) * itemsize            # resident weights/biases
        + B * D * itemsize + B * R * itemsize   # outputs
    )
    cost = pl.CostEstimate(
        flops=2 * B * R * D * H + 2 * B * R * H + 2 * B * R * D + 4 * B * R,
        transcendentals=B * R,
        bytes_accessed=bytes_accessed,
    )

    grid_spec = pltpu.PrefetchScalarGridSpec(
        num_scalar_prefetch=0,
        grid=(grid_b,),
        in_specs=[
            pl.BlockSpec((block_b, R, D), lambda b: (b, 0, 0)),  # x: TB rows per step
            pl.BlockSpec((D, H), lambda b: (0, 0)),              # W1 (resident)
            pl.BlockSpec((1, H), lambda b: (0, 0)),              # b1
            pl.BlockSpec((1, H), lambda b: (0, 0)),              # W2 row
        ],
        out_specs=[
            pl.BlockSpec((block_b, D), lambda b: (b, 0)),        # weighted_sum
            pl.BlockSpec((block_b, R), lambda b: (b, 0)),        # weights (lane-dense)
        ],
    )

    weighted_sum, weights = pl.pallas_call(
        agfw_kernel,
        out_shape=(
            jax.ShapeDtypeStruct((B, D), dtype),
            jax.ShapeDtypeStruct((B, R), dtype),
        ),
        grid_spec=grid_spec,
        compiler_params=pltpu.CompilerParams(
            dimension_semantics=("parallel",),   # shards batch blocks across v7x's 2 TCs
            vmem_limit_bytes=vmem_limit,         # generation-aware
        ),
        cost_estimate=cost,
    )(region_features, w1, b1_2d, w2_row)

    # PyTorch-style (B, R, 1) weights: reshape outside the kernel (free plumbing).
    return weighted_sum, weights.reshape(B, R, 1)


def agfw_reference(x, w1, b1, w2, b2):
    # Pure-JAX reference mirroring the PyTorch module (keeps b2).
    h = jnp.maximum(jnp.einsum("brd,dh->brh", x, w1) + b1, 0.0)
    scores = jnp.einsum("brh,h->br", h, w2.reshape(-1)) + b2      # (B, R)
    weights = jax.nn.softmax(scores, axis=-1)[..., None]          # (B, R, 1)
    weighted_sum = jnp.sum(weights * x, axis=1)                   # (B, D)
    return weighted_sum, weights


if __name__ == "__main__":
    # batch, regions, input_dim, hidden_dim (module default hidden_dim=64)
    B, R, D, H = 4, 8, 32, 64

    key = jax.random.PRNGKey(0)
    kx, k1, k2, k3, k4 = jax.random.split(key, 5)

    x = jax.random.normal(kx, (B, R, D), dtype=jnp.float32)

    # Deterministic "PyTorch-like" init (uniform in +-1/sqrt(fan_in)),
    # stored pre-transposed as (in, out).
    lim1 = 1.0 / jnp.sqrt(D)
    lim2 = 1.0 / jnp.sqrt(H)
    w1 = jax.random.uniform(k1, (D, H), jnp.float32, -lim1, lim1)
    b1 = jax.random.uniform(k2, (H,), jnp.float32, -lim1, lim1)
    w2 = jax.random.uniform(k3, (H,), jnp.float32, -lim2, lim2)
    b2 = jax.random.uniform(k4, (1,), jnp.float32, -lim2, lim2)

    weighted_sum, weights = agfw_forward(x, w1, b1, w2, b2)
    jax.block_until_ready((weighted_sum, weights))

    ref_ws, ref_w = agfw_reference(x, w1, b1, w2, b2)
    assert weighted_sum.shape == (B, D)
    assert weights.shape == (B, R, 1)
    assert jnp.allclose(weights, ref_w, atol=2e-3, rtol=2e-3)
    assert jnp.allclose(weighted_sum, ref_ws, atol=2e-3, rtol=2e-3)
    # Exact (non-approximate) softmax normalization -> tight sum-to-one check.
    assert jnp.allclose(jnp.sum(weights[..., 0], axis=-1), 1.0, atol=1e-4)

    print("KERNEL_OK")
</pallas_src>

<mosaic_0001>
module attributes {stable_mosaic.version = 11 : i64} {
  func.func @agfw_kernel(%arg0: i32, %arg1: memref<4x8x32xf32, #tpu.memory_space<vmem>>, %arg2: memref<32x64xf32, #tpu.memory_space<vmem>>, %arg3: memref<1x64xf32, #tpu.memory_space<vmem>>, %arg4: memref<1x64xf32, #tpu.memory_space<vmem>>, %arg5: memref<4x32xf32, #tpu.memory_space<vmem>>, %arg6: memref<4x8xf32, #tpu.memory_space<vmem>>) attributes {dimension_semantics = [#tpu.dimension_semantics<parallel>], iteration_bounds = array<i64: 1>, scalar_prefetch = 0 : i64, scratch_operands = 0 : i64, tpu.core_type = #tpu.core_type<tc>, window_params = [{transform_indices = @transform_0, window_bounds = array<i64: 4, 8, 32>}, {pipeline_mode = #tpu.pipeline_mode<synchronous>, transform_indices = @transform_1, window_bounds = array<i64: 32, 64>}, {pipeline_mode = #tpu.pipeline_mode<synchronous>, transform_indices = @transform_2, window_bounds = array<i64: 1, 64>}, {pipeline_mode = #tpu.pipeline_mode<synchronous>, transform_indices = @transform_3, window_bounds = array<i64: 1, 64>}, {transform_indices = @transform_4, window_bounds = array<i64: 4, 32>}, {transform_indices = @transform_5, window_bounds = array<i64: 4, 8>}]} {
    %c0 = arith.constant 0 : index
    %c0_0 = arith.constant 0 : index
    %c0_1 = arith.constant 0 : index
    %0 = vector.load %arg1[%c0, %c0_0, %c0_1] : memref<4x8x32xf32, #tpu.memory_space<vmem>>, vector<4x8x32xf32>
    %1 = vector.shape_cast %0 : vector<4x8x32xf32> to vector<32x32xf32>
    %c0_2 = arith.constant 0 : index
    %c0_3 = arith.constant 0 : index
    %2 = vector.load %arg2[%c0_2, %c0_3] : memref<32x64xf32, #tpu.memory_space<vmem>>, vector<32x64xf32>
    %cst = arith.constant dense<0.000000e+00> : vector<32x64xf32>
    %3 = tpu.matmul %1, %2, %cst {dimension_numbers = #tpu.dot_dimension_numbers<[1], [0], [0], [1], [0, 0, 1, 1], [], []>} : vector<32x32xf32>, vector<32x64xf32>, vector<32x64xf32> -> vector<32x64xf32>
    %c0_4 = arith.constant 0 : index
    %c0_5 = arith.constant 0 : index
    %4 = vector.load %arg3[%c0_4, %c0_5] : memref<1x64xf32, #tpu.memory_space<vmem>>, vector<1x64xf32>
    %5 = vector.broadcast %4 : vector<1x64xf32> to vector<32x64xf32>
    %6 = arith.addf %3, %5 : vector<32x64xf32>
    %cst_6 = arith.constant 0.000000e+00 : f32
    %7 = vector.broadcast %cst_6 : f32 to vector<32x64xf32>
    %8 = arith.maximumf %6, %7 : vector<32x64xf32>
    %9 = vector.shape_cast %8 : vector<32x64xf32> to vector<4x8x64xf32>
    %c0_7 = arith.constant 0 : index
    %c0_8 = arith.constant 0 : index
    %10 = vector.load %arg4[%c0_7, %c0_8] : memref<1x64xf32, #tpu.memory_space<vmem>>, vector<1x64xf32>
    %11 = vector.shape_cast %10 : vector<1x64xf32> to vector<1x1x64xf32>
    %12 = vector.broadcast %11 : vector<1x1x64xf32> to vector<4x8x64xf32>
    %13 = arith.mulf %9, %12 : vector<4x8x64xf32>
    %cst_9 = arith.constant dense<0.000000e+00> : vector<4x8xf32>
    %14 = vector.multi_reduction <add>, %13, %cst_9 [2] : vector<4x8x64xf32> to vector<4x8xf32>
    %cst_10 = arith.constant dense<0xFF800000> : vector<4xf32>
    %15 = vector.multi_reduction <maximumf>, %14, %cst_10 [1] : vector<4x8xf32> to vector<4xf32>
    %16 = vector.shape_cast %15 : vector<4xf32> to vector<4x1xf32>
    %17 = vector.broadcast %16 : vector<4x1xf32> to vector<4x8xf32>
    %18 = arith.subf %14, %17 : vector<4x8xf32>
    %19 = math.exp %18 : vector<4x8xf32>
    %cst_11 = arith.constant dense<0.000000e+00> : vector<4xf32>
    %20 = vector.multi_reduction <add>, %19, %cst_11 [1] : vector<4x8xf32> to vector<4xf32>
    %21 = vector.shape_cast %20 : vector<4xf32> to vector<4x1xf32>
    %22 = vector.broadcast %21 : vector<4x1xf32> to vector<4x8xf32>
    %23 = arith.divf %19, %22 : vector<4x8xf32>
    %c0_12 = arith.constant 0 : index
    %c0_13 = arith.constant 0 : index
    %24 = vector.load %arg6[%c0_12, %c0_13] : memref<4x8xf32, #tpu.memory_space<vmem>>, vector<4x8xf32>
    tpu.vector_store %arg6[%c0_12, %c0_13], %23 {strides = array<i32>} : memref<4x8xf32, #tpu.memory_space<vmem>>, vector<4x8xf32>,
    %25 = vector.shape_cast %23 : vector<4x8xf32> to vector<4x8x1xf32>
    %26 = vector.broadcast %25 : vector<4x8x1xf32> to vector<4x8x32xf32>
    %27 = arith.mulf %26, %0 : vector<4x8x32xf32>
    %cst_14 = arith.constant dense<0.000000e+00> : vector<4x32xf32>
    %28 = vector.multi_reduction <add>, %27, %cst_14 [1] : vector<4x8x32xf32> to vector<4x32xf32>
    %c0_15 = arith.constant 0 : index
    %c0_16 = arith.constant 0 : index
    %29 = vector.load %arg5[%c0_15, %c0_16] : memref<4x32xf32, #tpu.memory_space<vmem>>, vector<4x32xf32>
    tpu.vector_store %arg5[%c0_15, %c0_16], %28 {strides = array<i32>} : memref<4x32xf32, #tpu.memory_space<vmem>>, vector<4x32xf32>,
    return
  }
  func.func @transform_0(%arg0: i32) -> (i32, i32, i32) {
    %c0_i32 = arith.constant 0 : i32
    %c0_i32_0 = arith.constant 0 : i32
    %c0_i32_1 = arith.constant 0 : i32
    return %arg0, %c0_i32, %c0_i32_0 : i32, i32, i32
  }
  func.func @transform_1(%arg0: i32) -> (i32, i32) {
    %c0_i32 = arith.constant 0 : i32
    %c0_i32_0 = arith.constant 0 : i32
    %c0_i32_1 = arith.constant 0 : i32
    return %c0_i32, %c0_i32_0 : i32, i32
  }
  func.func @transform_2(%arg0: i32) -> (i32, i32) {
    %c0_i32 = arith.constant 0 : i32
    %c0_i32_0 = arith.constant 0 : i32
    %c0_i32_1 = arith.constant 0 : i32
    return %c0_i32, %c0_i32_0 : i32, i32
  }
  func.func @transform_3(%arg0: i32) -> (i32, i32) {
    %c0_i32 = arith.constant 0 : i32
    %c0_i32_0 = arith.constant 0 : i32
    %c0_i32_1 = arith.constant 0 : i32
    return %c0_i32, %c0_i32_0 : i32, i32
  }
  func.func @transform_4(%arg0: i32) -> (i32, i32) {
    %c0_i32 = arith.constant 0 : i32
    %c0_i32_0 = arith.constant 0 : i32
    return %arg0, %c0_i32 : i32, i32
  }
  func.func @transform_5(%arg0: i32) -> (i32, i32) {
    %c0_i32 = arith.constant 0 : i32
    %c0_i32_0 = arith.constant 0 : i32
    return %arg0, %c0_i32 : i32, i32
  }
}

</mosaic_0001>

<llo_original>
// kernel: tpu_custom_call.1
$region0: #{tpu_custom_call.1}
  #allocation0 [shape = 'u32[]', space=smem, size = 0x4, offset = 0x4, fixed_abs, tag = 'smem constant byte address 0x4 - core index']
  #allocation1 [shape = 'u32[144,128]{1,0:T(1,128)}', space=vmem, size = 0x12000, scoped, tag = 'internal scratch']
  %s0 = inlined_call_operand.hbm [shape: f32[4,8,32], index: 0, kind: input, shape index: {}]
  %s1 = inlined_call_operand.hbm [shape: f32[32,64], index: 1, kind: input, shape index: {}]
  %s2 = inlined_call_operand.vmem [shape: f32[1,64], index: 2, kind: input, shape index: {}]
  %s3 = inlined_call_operand.vmem [shape: f32[1,64], index: 3, kind: input, shape index: {}]
  %s4 = inlined_call_operand.hbm [shape: f32[4,32], index: 4, kind: output, shape index: {0}]
  %s5 = inlined_call_operand.hbm [shape: f32[4,8], index: 5, kind: output, shape index: {1}]
  %6 = xla_tuple %s4, %s5
  %s7 = sld [smem:[#allocation0]]
  $region42: #{tpu_custom_call.1} parent=0
    _
  %s9 = ssub.s32 1, %s7
  %s10 = scalar_select 0, %s9, %s7
  $region1: #{tpu_custom_call.1} parent=0
    #allocation2 [shape = 'u8[16384]{0}', space=vmem, size = 0x4000, scoped, tag = 'input window, operand 0, single buffered']
    #allocation3 [shape = 's32[1]{0}', space=sflag, size = 0x4, scoped, tag = 'scoped memory for tpu_custom_call.1']
    #allocation4 [shape = 's32[1]{0}', space=sflag, size = 0x4, scoped, tag = 'scoped memory for tpu_custom_call.1']
    #allocation5 [shape = 'u8[16384]{0}', space=vmem, size = 0x4000, scoped, tag = 'input window, operand 1, single buffered']
    #allocation6 [shape = 's32[1]{0}', space=sflag, size = 0x4, scoped, tag = 'scoped memory for tpu_custom_call.1']
    #allocation7 [shape = 'u8[2048]{0}', space=vmem, size = 0x800, scoped, tag = 'output window, operand 0, single buffered']
    #allocation8 [shape = 'u8[2048]{0}', space=vmem, size = 0x800, scoped, tag = 'output window, operand 1, single buffered']
    #allocation9 [shape = 's32[1]{0}', space=sflag, size = 0x4, scoped, tag = 'scoped memory for tpu_custom_call.1']
    %11 = vsyncpa [#allocation3], 0
    %12 = vsyncpa [#allocation6], 0
    %13 = vsyncpa [#allocation4], 0
    %14 = vsyncpa [#allocation9], 0
    // Predicated region
    $region2: #{tpu_custom_call.1} parent=1 // pred_check
      _
    $region3: #{tpu_custom_call.1} parent=1 // pred_check_branch
      %16 = sbr.rel (0) target = $region5
    $region4: #{tpu_custom_call.1} parent=1 // pred_region
      %s18 = ssub.s32 512, 512
      %19 = vsyncadd [#allocation3], %s18
      %s20 = sshll.u32 [#allocation2], 4
      %s21 = int_to_ptr.vmem [resolvable:$true] %s20
      %26 = dma.hbm_to_vmem [thread:$0]  %s0, 512, %s21, [#allocation3], 128, 128, 8
    $region5: #{tpu_custom_call.1} parent=1 // pred_fallthru
      _
    // Predicated region
    $region6: #{tpu_custom_call.1} parent=1 // pred_check
      _
    $region7: #{tpu_custom_call.1} parent=1 // pred_check_branch
      %28 = sbr.rel (0) target = $region9
    $region8: #{tpu_custom_call.1} parent=1 // pred_region
      %s30 = ssub.s32 512, 512
      %31 = vsyncadd [#allocation6], %s30
      %s32 = sshll.u32 [#allocation5], 4
      %s33 = int_to_ptr.vmem [resolvable:$true] %s32
      %38 = dma.hbm_to_vmem [thread:$0]  %s1, 512, %s33, [#allocation6], 128, 128, 8
    $region9: #{tpu_custom_call.1} parent=1 // pred_fallthru
      _
    // Predicated region
    $region10: #{tpu_custom_call.1} parent=1 // pred_check
      _
    $region11: #{tpu_custom_call.1} parent=1 // pred_check_branch
      %40 = sbr.rel (0) target = $region13
    $region12: #{tpu_custom_call.1} parent=1 // pred_region
      _
    $region13: #{tpu_custom_call.1} parent=1 // pred_fallthru
      _
    // Predicated region
    $region14: #{tpu_custom_call.1} parent=1 // pred_check
      _
    $region15: #{tpu_custom_call.1} parent=1 // pred_check_branch
      %42 = sbr.rel (0) target = $region17
    $region16: #{tpu_custom_call.1} parent=1 // pred_region
      _
    $region17: #{tpu_custom_call.1} parent=1 // pred_fallthru
      _
    // Predicated region
    $region18: #{tpu_custom_call.1} parent=1 // pred_check
      _
    $region19: #{tpu_custom_call.1} parent=1 // pred_check_branch
      %44 = sbr.rel (0) target = $region21
    $region20: #{tpu_custom_call.1} parent=1 // pred_region
      %45 = dma.done [#allocation3], 512
    $region21: #{tpu_custom_call.1} parent=1 // pred_fallthru
      _
    // Predicated region
    $region22: #{tpu_custom_call.1} parent=1 // pred_check
      _
    $region23: #{tpu_custom_call.1} parent=1 // pred_check_branch
      %47 = sbr.rel (0) target = $region25
    $region24: #{tpu_custom_call.1} parent=1 // pred_region
      %48 = dma.done [#allocation6], 512
    $region25: #{tpu_custom_call.1} parent=1 // pred_fallthru
      _
    %v49 = vld [vmem:[#allocation2] sm:$0xff]
    %v50 = vld [vmem:[#allocation2 + $0x8] sm:$0xff]
    %v51 = vld [vmem:[#allocation2 + $0x10] sm:$0xff]
    %v52 = vld [vmem:[#allocation2 + $0x18] sm:$0xff]
    %v53 = vld [vmem:[#allocation5] sm:$0xff]
    %v54 = vld [vmem:[#allocation5 + $0x8] sm:$0xff]
    %v55 = vld [vmem:[#allocation5 + $0x10] sm:$0xff]
    %v56 = vld [vmem:[#allocation5 + $0x18] sm:$0xff]
    %v57 = vld [vmem:[%s2] sm:$0x1]
    %v59 = vlaneseq
    %v60 = vshrl.u32 %v59, 7
    %v61 = vsub.s32 0, %v60
    %v62 = vrot.slane %v57, %v61
    %vm64 = vcmask 261120
    %v66 = vsel %vm64, %v49, 0
    %v69 = vsel %vm64, %v50, 0
    %v72 = vsel %vm64, %v51, 0
    %v75 = vsel %vm64, %v52, 0
    %77 = vmatprep.subr.mxu0 0.0
    %78 = vmatpush1.msra.mxu0 %v53
    %79 = vmatprep.subr.mxu0 0.0
    %80 = vmatpush1.msra.mxu0 %v54
    %81 = vmatprep.subr.mxu0 0.0
    %82 = vmatpush1.msra.mxu0 %v55
    %83 = vmatprep.subr.mxu0 0.0
    %84 = vmatpush1.msra.mxu0 %v56
    %85 = vmatprep.subr.mxu0 0.0
    %86 = vmatpush1.msra.mxu0 0.0
    %87 = vmatprep.subr.mxu0 0.0
    %88 = vmatpush1.msra.mxu0 0.0
    %89 = vmatprep.subr.mxu0 0.0
    %90 = vmatpush1.msra.mxu0 0.0
    %91 = vmatprep.subr.mxu0 0.0
    %92 = vmatpush1.msra.mxu0 0.0
    %93 = vmatprep.subr.mxu0 0.0
    %94 = vmatpush1.msra.mxu0 0.0
    %95 = vmatprep.subr.mxu0 0.0
    %96 = vmatpush1.msra.mxu0 0.0
    %97 = vmatprep.subr.mxu0 0.0
    %98 = vmatpush1.msra.mxu0 0.0
    %99 = vmatprep.subr.mxu0 0.0
    %100 = vmatpush1.msra.mxu0 0.0
    %101 = vmatprep.subr.mxu0 0.0
    %102 = vmatpush1.msra.mxu0 0.0
    %103 = vmatprep.subr.mxu0 0.0
    %104 = vmatpush1.msra.mxu0 0.0
    %105 = vmatprep.subr.mxu0 0.0
    %106 = vmatpush1.msra.mxu0 0.0
    %107 = vmatprep.subr.mxu0 0.0
    %108 = vmatpush1.msra.mxu0 0.0
    %109 = vmatprep.subr.mxu0 0.0
    %110 = vmatpush1.msra.mxu0 0.0
    %111 = vmatprep.subr.mxu0 0.0
    %112 = vmatpush1.msra.mxu0 0.0
    %113 = vmatprep.subr.mxu0 0.0
    %114 = vmatpush1.msra.mxu0 0.0
    %115 = vmatprep.subr.mxu0 0.0
    %116 = vmatpush1.msra.mxu0 0.0
    %117 = vmatprep.subr.mxu0 0.0
    %118 = vmatpush1.msra.mxu0 0.0
    %119 = vmatprep.subr.mxu0 0.0
    %120 = vmatpush1.msra.mxu0 0.0
    %121 = vmatprep.subr.mxu0 0.0
    %122 = vmatpush1.msra.mxu0 0.0
    %123 = vmatprep.subr.mxu0 0.0
    %124 = vmatpush1.msra.mxu0 0.0
    %125 = vmatprep.subr.mxu0 0.0
    %126 = vmatpush1.msra.mxu0 0.0
    %127 = vmatprep.subr.mxu0 0.0
    %128 = vmatpush1.msra.mxu0 0.0
    %129 = vmatprep.subr.mxu0 0.0
    %130 = vmatpush1.msra.mxu0 0.0
    %131 = vmatprep.subr.mxu0 0.0
    %132 = vmatpush1.msra.mxu0 0.0
    %133 = vmatprep.subr.mxu0 0.0
    %134 = vmatpush1.msra.mxu0 0.0
    %135 = vmatprep.subr.mxu0 0.0
    %136 = vmatpush1.msra.mxu0 0.0
    %137 = vmatprep.subr.mxu0 0.0
    %138 = vmatpush1.msra.mxu0 0.0
    %139 = vmatprep.subr.mxu0 0.0
    %140 = vmatpush1.msra.mxu0 0.0
    %141 = vmatprep.mubr.f32.mxu0 0.0
    %142 = vmatmul.mubr.f32.gmra.mrb[0].mxu0 %v66
    %v143 = vpop.f32.mrb[0].mxu0
    %v144 = vadd.f32 %v62, %v143
    %v145 = vpop.f32.mrb[0].mxu0
    %146 = vmatprep.mubr.f32.mxu0 0.0
    %147 = vmatmul.mubr.f32.gmra.mrb[0].mxu0 %v69
    %v148 = vpop.f32.mrb[0].mxu0
    %v149 = vadd.f32 %v62, %v148
    %v150 = vpop.f32.mrb[0].mxu0
    %151 = vmatprep.mubr.f32.mxu0 0.0
    %152 = vmatmul.mubr.f32.gmra.mrb[0].mxu0 %v72
    %v153 = vpop.f32.mrb[0].mxu0
    %v154 = vadd.f32 %v62, %v153
    %v155 = vpop.f32.mrb[0].mxu0
    %156 = vmatprep.mubr.f32.mxu0 0.0
    %157 = vmatmul.mubr.f32.gmra.mrb[0].mxu0 %v75
    %v158 = vpop.f32.mrb[0].mxu0
    %v159 = vadd.f32 %v62, %v158
    %v160 = vpop.f32.mrb[0].mxu0
    %161 = vdwg.mxu0
    %v162 = vmax.f32 %v144, 0.0
    %v163 = vmax.f32 %v149, 0.0
    %v164 = vmax.f32 %v154, 0.0
    %v165 = vmax.f32 %v159, 0.0
    %v166 = vld [vmem:[%s3] sm:$0x1]
    %v168 = vlaneseq
    %v169 = vshrl.u32 %v168, 7
    %v170 = vsub.s32 0, %v169
    %v171 = vrot.slane %v166, %v170
    %v173 = vmul.f32 %v162, %v171
    %v174 = vmul.f32 %v163, %v171
    %v175 = vmul.f32 %v164, %v171
    %v176 = vmul.f32 %v165, %v171
    %vm177 = vcmask 523264
    %v178 = vsel %vm177, %v173, 0.0
    %179 = vadd.xlane.f32.xlu0 %v178
    %v180 = vpop.xlane.xlu0 %179
    %v181 = vsel %vm177, %v174, 0.0
    %182 = vadd.xlane.f32.xlu0 %v181
    %v183 = vpop.xlane.xlu0 %182
    %v184 = vsel %vm177, %v175, 0.0
    %185 = vadd.xlane.f32.xlu0 %v184
    %v186 = vpop.xlane.xlu0 %185
    %v187 = vsel %vm177, %v176, 0.0
    %188 = vadd.xlane.f32.xlu0 %v187
    %v189 = vpop.xlane.xlu0 %188
    %v194 = vlaneseq
    %v195 = vand.u32 %v194, 127
    %v196 = vlaneseq
    %v197 = vshrl.u32 %v196, 7
    %v198 = vsub.s32 %v195, %v197
    %v199 = vrot.slane %v180, %v198
    %v200 = vlaneseq
    %v201 = vshrl.u32 %v200, 7
    %v202 = vsub.s32 %v195, %v201
    %v203 = vrot.slane %v183, %v202
    %v204 = vlaneseq
    %v205 = vshrl.u32 %v204, 7
    %v206 = vsub.s32 %v195, %v205
    %v207 = vrot.slane %v186, %v206
    %v208 = vlaneseq
    %v209 = vshrl.u32 %v208, 7
    %v210 = vsub.s32 %v195, %v209
    %v211 = vrot.slane %v189, %v210
    %vm212 = vcmask 1041409
    %v213 = vsel %vm212, %v203, %v199
    %vm214 = vcmask 1042434
    %v215 = vsel %vm214, %v207, %v213
    %vm216 = vcmask 1043459
    %v217 = vsel %vm216, %v211, %v215
    %vm219 = vcmask 60416
    %v220 = vsel %vm219, %v217, -inf
    %221 = vmax.xlane.f32.xlu0 %v220
    %v222 = vpop.xlane.xlu0 %221
    %v224 = vlaneseq
    %v225 = vshrl.u32 %v224, 7
    %v226 = vsub.s32 0, %v225
    %v227 = vrot.slane %v222, %v226
    %v228 = vlaneseq
    %v229 = vshrl.u32 %v228, 7
    %v230 = vsub.s32 1, %v229
    %v231 = vrot.slane %v222, %v230
    %v232 = vlaneseq
    %v233 = vshrl.u32 %v232, 7
    %v234 = vsub.s32 2, %v233
    %v235 = vrot.slane %v222, %v234
    %v236 = vlaneseq
    %v237 = vshrl.u32 %v236, 7
    %v238 = vsub.s32 3, %v237
    %v239 = vrot.slane %v222, %v238
    %v244 = vsub.f32 %v180, %v227
    %v245 = vsub.f32 %v183, %v231
    %v246 = vsub.f32 %v186, %v235
    %v247 = vsub.f32 %v189, %v239
    %v248 = vmul.f32 %v244, 1.442695
    %v249 = vpow.pop %v248
    %v250 = vmul.f32 %v245, 1.442695
    %v251 = vpow.pop %v250
    %v252 = vmul.f32 %v246, 1.442695
    %v253 = vpow.pop %v252
    %v254 = vmul.f32 %v247, 1.442695
    %v255 = vpow.pop %v254
    %260 = vset.pattern.permute.xlu0 0
    %261 = vperm.xlu0 %260, %v249
    %v262 = vpop.permute.xlu0 %261
    %263 = vset.pattern.permute.xlu0 0
    %264 = vperm.xlu0 %263, %v251
    %v265 = vpop.permute.xlu0 %264
    %266 = vset.pattern.permute.xlu0 0
    %267 = vperm.xlu0 %266, %v253
    %v268 = vpop.permute.xlu0 %267
    %269 = vset.pattern.permute.xlu0 0
    %270 = vperm.xlu0 %269, %v255
    %v271 = vpop.permute.xlu0 %270
    %v272 = vlaneseq
    %v273 = vshrl.u32 %v272, 7
    %v274 = vsub.s32 %v195, %v273
    %v275 = vrot.slane %v262, %v274
    %v276 = vlaneseq
    %v277 = vshrl.u32 %v276, 7
    %v278 = vsub.s32 %v195, %v277
    %v279 = vrot.slane %v265, %v278
    %v280 = vlaneseq
    %v281 = vshrl.u32 %v280, 7
    %v282 = vsub.s32 %v195, %v281
    %v283 = vrot.slane %v268, %v282
    %v284 = vlaneseq
    %v285 = vshrl.u32 %v284, 7
    %v286 = vsub.s32 %v195, %v285
    %v287 = vrot.slane %v271, %v286
    %v288 = vsel %vm212, %v279, %v275
    %v289 = vsel %vm214, %v283, %v288
    %v290 = vsel %vm216, %v287, %v289
    %v292 = vsel %vm219, %v290, 0.0
    %293 = vadd.xlane.f32.xlu0 %v292
    %v294 = vpop.xlane.xlu0 %293
    %v296 = vlaneseq
    %v297 = vshrl.u32 %v296, 7
    %v298 = vsub.s32 0, %v297
    %v299 = vrot.slane %v294, %v298
    %v300 = vlaneseq
    %v301 = vshrl.u32 %v300, 7
    %v302 = vsub.s32 1, %v301
    %v303 = vrot.slane %v294, %v302
    %v304 = vlaneseq
    %v305 = vshrl.u32 %v304, 7
    %v306 = vsub.s32 2, %v305
    %v307 = vrot.slane %v294, %v306
    %v308 = vlaneseq
    %v309 = vshrl.u32 %v308, 7
    %v310 = vsub.s32 3, %v309
    %v311 = vrot.slane %v294, %v310
    %v316 = vrcp.pop %v299
    %v317 = vmul.f32 %v249, %v316
    %v318 = vrcp.pop %v303
    %v319 = vmul.f32 %v251, %v318
    %v320 = vrcp.pop %v307
    %v321 = vmul.f32 %v253, %v320
    %v322 = vrcp.pop %v311
    %v323 = vmul.f32 %v255, %v322
    %328 = vset.pattern.permute.xlu0 0
    %329 = vperm.xlu0 %328, %v317
    %v330 = vpop.permute.xlu0 %329
    %331 = vset.pattern.permute.xlu0 0
    %332 = vperm.xlu0 %331, %v319
    %v333 = vpop.permute.xlu0 %332
    %334 = vset.pattern.permute.xlu0 0
    %335 = vperm.xlu0 %334, %v321
    %v336 = vpop.permute.xlu0 %335
    %337 = vset.pattern.permute.xlu0 0
    %338 = vperm.xlu0 %337, %v323
    %v339 = vpop.permute.xlu0 %338
    %v340 = vlaneseq
    %v341 = vshrl.u32 %v340, 7
    %v342 = vsub.s32 %v195, %v341
    %v343 = vrot.slane %v330, %v342
    %v344 = vlaneseq
    %v345 = vshrl.u32 %v344, 7
    %v346 = vsub.s32 %v195, %v345
    %v347 = vrot.slane %v333, %v346
    %v348 = vlaneseq
    %v349 = vshrl.u32 %v348, 7
    %v350 = vsub.s32 %v195, %v349
    %v351 = vrot.slane %v336, %v350
    %v352 = vlaneseq
    %v353 = vshrl.u32 %v352, 7
    %v354 = vsub.s32 %v195, %v353
    %v355 = vrot.slane %v339, %v354
    %v356 = vsel %vm212, %v347, %v343
    %v357 = vsel %vm214, %v351, %v356
    %v358 = vsel %vm216, %v355, %v357
    %360 = vst.msk [vmem:[#allocation8] sm:$0xf] %vm219, %v358
    %v365 = vmul.f32 %v330, %v49
    %v366 = vmul.f32 %v333, %v50
    %v367 = vmul.f32 %v336, %v51
    %v368 = vmul.f32 %v339, %v52
    %v369 = vsel %vm64, %v365, 0.0
    %v370 = vrot.slane %v369, 4
    %v371 = vadd.f32 %v369, %v370
    %v372 = vrot.slane %v371, 2
    %v373 = vadd.f32 %v371, %v372
    %v374 = vrot.slane %v373, 1
    %v375 = vadd.f32 %v373, %v374
    %v376 = vsel %vm64, %v366, 0.0
    %v377 = vrot.slane %v376, 4
    %v378 = vadd.f32 %v376, %v377
    %v379 = vrot.slane %v378, 2
    %v380 = vadd.f32 %v378, %v379
    %v381 = vrot.slane %v380, 1
    %v382 = vadd.f32 %v380, %v381
    %v383 = vsel %vm64, %v367, 0.0
    %v384 = vrot.slane %v383, 4
    %v385 = vadd.f32 %v383, %v384
    %v386 = vrot.slane %v385, 2
    %v387 = vadd.f32 %v385, %v386
    %v388 = vrot.slane %v387, 1
    %v389 = vadd.f32 %v387, %v388
    %v390 = vsel %vm64, %v368, 0.0
    %v391 = vrot.slane %v390, 4
    %v392 = vadd.f32 %v390, %v391
    %v393 = vrot.slane %v392, 2
    %v394 = vadd.f32 %v392, %v393
    %v395 = vrot.slane %v394, 1
    %v396 = vadd.f32 %v394, %v395
    %v401 = vsel %vm212, %v382, %v375
    %v402 = vsel %vm214, %v389, %v401
    %v403 = vsel %vm216, %v396, %v402
    %vm405 = vcmask 257024
    %406 = vst.msk [vmem:[#allocation7] sm:$0xf] %vm405, %v403
    // Predicated region
    $region26: #{tpu_custom_call.1} parent=1 // pred_check
      _
    $region27: #{tpu_custom_call.1} parent=1 // pred_check_branch
      %408 = sbr.rel (0) target = $region29
    $region28: #{tpu_custom_call.1} parent=1 // pred_region
      %s410 = ssub.s32 64, 64
      %411 = vsyncadd [#allocation4], %s410
      %s413 = sshll.u32 [#allocation7], 4
      %s414 = int_to_ptr.vmem [resolvable:$true] %s413
      %416 = dma.vmem_to_hbm [thread:$0]  %s414, 64, %s4, [#allocation4]
    $region29: #{tpu_custom_call.1} parent=1 // pred_fallthru
      _
    // Predicated region
    $region30: #{tpu_custom_call.1} parent=1 // pred_check
      _
    $region31: #{tpu_custom_call.1} parent=1 // pred_check_branch
      %418 = sbr.rel (0) target = $region33
    $region32: #{tpu_custom_call.1} parent=1 // pred_region
      %s420 = ssub.s32 64, 64
      %421 = vsyncadd [#allocation9], %s420
      %s423 = sshll.u32 [#allocation8], 4
      %s424 = int_to_ptr.vmem [resolvable:$true] %s423
      %426 = dma.vmem_to_hbm [thread:$0]  %s424, 64, %s5, [#allocation9]
    $region33: #{tpu_custom_call.1} parent=1 // pred_fallthru
      _
    // Predicated region
    $region34: #{tpu_custom_call.1} parent=1 // pred_check
      _
    $region35: #{tpu_custom_call.1} parent=1 // pred_check_branch
      %428 = sbr.rel (0) target = $region37
    $region36: #{tpu_custom_call.1} parent=1 // pred_region
      %429 = dma.done [#allocation4], 64
    $region37: #{tpu_custom_call.1} parent=1 // pred_fallthru
      _
    // Predicated region
    $region38: #{tpu_custom_call.1} parent=1 // pred_check
      _
    $region39: #{tpu_custom_call.1} parent=1 // pred_check_branch
      %431 = sbr.rel (0) target = $region41
    $region40: #{tpu_custom_call.1} parent=1 // pred_region
      %432 = dma.done [#allocation9], 64
    $region41: #{tpu_custom_call.1} parent=1 // pred_fallthru
      _
    %433 = vsyncpa [#allocation3], 1
    %434 = vsyncpa [#allocation6], 1
    %435 = vsyncpa [#allocation4], 1
    %436 = vsyncpa [#allocation9], 1

</llo_original>
